<compile_context>
chip_gen: v5e
topology: v5e:2x2
jax: 0.10.0
libtpu: 0.0.40
codegen_flags: <defaults>
</compile_context>

<pallas_src>
import numpy as np

import jax
import jax.numpy as jnp
from jax.experimental import pallas as pl
from jax.experimental.pallas import tpu as pltpu


_FUSED_TABLE_VMEM_LIMIT = 16 * 1024 * 1024  # bytes; above this, don't keep table in VMEM


def _make_kernel(out_dtype):
    def kernel(x_ref, sel_ref, liota_ref, table_ref, out_ref):
        # (TB, F) raw indices -> f32 (exact for any realistic cardinality).
        xf = x_ref[...].astype(jnp.float32)
        # Broadcast each feature's index value across its 0/1 selector column
        # block with one tiny MXU matmul (K = F).  HIGHEST precision keeps the
        # integer values exact even for large cardinalities.
        xb = jax.lax.dot_general(
            xf,
            sel_ref[...],
            dimension_numbers=(((1,), (0,)), ((), ())),
            precision=jax.lax.Precision.HIGHEST,
            preferred_element_type=jnp.float32,
        )  # (TB, c_pad)
        # Single full-width compare against the per-column local index
        # (base offsets already folded into the constant); padding columns
        # carry -1 so they never match.
        onehot = (xb == liota_ref[...]).astype(jnp.bfloat16)  # (TB, c_pad)
        # One MXU matmul against the block-diagonal bf16 table; each output
        # element is exactly one bf16 table entry (0/1 weights), so casting
        # back to bf16 is exact.
        out_ref[...] = jnp.dot(
            onehot, table_ref[...], preferred_element_type=jnp.float32
        ).astype(out_dtype)

    return kernel


def build_multi_embedder_params(tables, dtype=jnp.bfloat16):
    """Build (once per table-set) the fused block-diagonal table and the
    constant selector / local-iota operands, host-side in numpy."""
    cards = [int(t.shape[0]) for t in tables]
    dims = [int(t.shape[1]) for t in tables]
    num_features = len(tables)
    c_total = sum(cards)
    out_dim = sum(dims)
    c_pad = max(128, ((c_total + 127) // 128) * 128)       # matmul K, lane aligned
    out_pad = max(128, ((out_dim + 127) // 128) * 128)     # lane-dense output width

    big = np.zeros((c_pad, out_pad), np.float32)           # block-diagonal table
    sel = np.zeros((num_features, c_pad), np.float32)      # 0/1 column-block selector
    liota = np.full((1, c_pad), -1.0, np.float32)          # per-column local index
    r = c = 0
    for i, (t, card, dim) in enumerate(zip(tables, cards, dims)):
        big[r : r + card, c : c + dim] = np.asarray(t, np.float32)
        sel[i, r : r + card] = 1.0
        liota[0, r : r + card] = np.arange(card, dtype=np.float32)
        r += card
        c += dim

    return dict(
        table=jnp.asarray(big, dtype=dtype),
        sel=jnp.asarray(sel, jnp.float32),
        liota=jnp.asarray(liota, jnp.float32),
        cards=cards,
        dims=dims,
        num_features=num_features,
        out_dim=out_dim,
        c_pad=c_pad,
        out_pad=out_pad,
        dtype=dtype,
    )


def multi_embedder(x, params, *, tb=2048, trim=True):
    """x: (B, F) int indices; params from build_multi_embedder_params.

    Returns (B, sum(dims)) in params['dtype'] (features concatenated in table
    order, identical to torch.cat([emb_i(x[:, i]) ...], dim=-1) up to the
    intended bf16 quantization of the stored tables).  With trim=False the
    padded lane-dense (b_pad, out_pad) buffer is returned (preferred when the
    consumer can be fused / tolerates padding: avoids an extra HBM pass).
    """
    assert x.ndim == 2 and x.shape[1] == params["num_features"]
    B, F = x.shape
    c_pad, out_pad, out_dim = params["c_pad"], params["out_pad"], params["out_dim"]
    out_dtype = params["dtype"]

    table_bytes = int(c_pad) * int(out_pad) * jnp.dtype(out_dtype).itemsize
    if table_bytes > _FUSED_TABLE_VMEM_LIMIT:
        # TODO(synk): scalar-prefetch / manual-DMA HBM row gather for very
        # large fused vocabularies; plain XLA gather fallback for now.
        outs, r, c = [], 0, 0
        for i, (card, dim) in enumerate(zip(params["cards"], params["dims"])):
            outs.append(jnp.take(params["table"][r : r + card, c : c + dim], x[:, i], axis=0))
            r += card
            c += dim
        return jnp.concatenate(outs, axis=-1)

    # Batch tiling: tb forced to a multiple of 8, pad B so the grid divides
    # evenly (pad rows use index 0, their output is sliced away).
    tb = max(8, (int(tb) // 8) * 8)
    tb = min(tb, pl.cdiv(B, 8) * 8)
    b_pad = pl.cdiv(B, tb) * tb
    xi = x if x.dtype == jnp.int32 else x.astype(jnp.int32)
    if b_pad != B:
        xi = jnp.pad(xi, ((0, b_pad - B), (0, 0)))
    grid = (b_pad // tb,)

    kernel = _make_kernel(out_dtype)
    out_shape = jax.ShapeDtypeStruct((b_pad, out_pad), out_dtype)
    vmem_limit = int(min(64 * 1024 * 1024, 32 * 1024 * 1024 + 2 * table_bytes))

    def run(single_buffer_resident):
        def resident(shape):
            if single_buffer_resident:
                return pl.BlockSpec(shape, lambda i: (0, 0), pipeline_mode=pl.Buffered(1))
            return pl.BlockSpec(shape, lambda i: (0, 0))

        return pl.pallas_call(
            kernel,
            out_shape=out_shape,
            grid=grid,
            in_specs=[
                pl.BlockSpec((tb, F), lambda i: (i, 0)),   # index tile, pipelined
                resident((F, c_pad)),                      # selector, VMEM-resident
                resident((1, c_pad)),                      # local iota, VMEM-resident
                resident((c_pad, out_pad)),                # fused table, VMEM-resident
            ],
            out_specs=pl.BlockSpec((tb, out_pad), lambda i: (i, 0)),
            compiler_params=pltpu.CompilerParams(
                dimension_semantics=("parallel",),
                vmem_limit_bytes=vmem_limit,
            ),
        )(xi, params["sel"], params["liota"], params["table"])

    try:
        out = run(True)     # single-buffer the grid-invariant operands
    except Exception:       # pipeline_mode / Buffered(1) unsupported -> default buffering
        out = run(False)

    if trim:
        if b_pad != B or out_pad != out_dim:
            out = out[:B, :out_dim]
        return out
    return out[:B] if b_pad != B else out


def multi_embedder_ref(x, tables):
    """Pure-JAX reference of the PyTorch forward (given table dtype)."""
    return jnp.concatenate(
        [jnp.take(t, x[:, i], axis=0) for i, t in enumerate(tables)], axis=-1
    )


if __name__ == "__main__":
    key = jax.random.PRNGKey(0)

    # Module config (small, deterministic)
    input_cardinalities = [11, 7, 5, 19]
    embedding_dims = [8, 16, 4, 32]
    batch = 8

    # Deterministic parameter init: nn.Embedding default is N(0, 1).
    keys = jax.random.split(key, len(input_cardinalities) + 1)
    tables = [
        jax.random.normal(keys[i], (card, dim), dtype=jnp.float32)
        for i, (card, dim) in enumerate(zip(input_cardinalities, embedding_dims))
    ]

    # Integer index inputs, one column per embedding table.
    x_cols = []
    for i, card in enumerate(input_cardinalities):
        x_cols.append(
            jax.random.randint(
                jax.random.fold_in(keys[-1], i), (batch, 1), 0, card, dtype=jnp.int32
            )
        )
    x = jnp.concatenate(x_cols, axis=-1)  # (batch, num_features) int32

    # Build fused table / selector / local-iota once per table-set.
    params = build_multi_embedder_params(tables, dtype=jnp.bfloat16)

    out = multi_embedder(x, params)
    out = jax.block_until_ready(out)

    # Reference: gather from the (intentionally) bf16-quantized tables — the
    # kernel's selection is exact, so this must match bit-for-bit.
    ref = multi_embedder_ref(x, [t.astype(jnp.bfloat16) for t in tables])
    assert out.shape == (batch, sum(embedding_dims)), out.shape
    assert out.dtype == jnp.bfloat16, out.dtype
    assert jnp.array_equal(out.astype(jnp.float32), ref.astype(jnp.float32)), (
        "kernel output mismatch vs reference"
    )

    print("KERNEL_OK")
</pallas_src>

<mosaic_0001>
module attributes {stable_mosaic.version = 11 : i64} {
  func.func @kernel(%arg0: i32, %arg1: memref<8x4xi32, #tpu.memory_space<vmem>>, %arg2: memref<4x128xf32, #tpu.memory_space<vmem>>, %arg3: memref<1x128xf32, #tpu.memory_space<vmem>>, %arg4: memref<128x128xbf16, #tpu.memory_space<vmem>>, %arg5: memref<8x128xbf16, #tpu.memory_space<vmem>>) attributes {dimension_semantics = [#tpu.dimension_semantics<parallel>], iteration_bounds = array<i64: 1>, scalar_prefetch = 0 : i64, scratch_operands = 0 : i64, tpu.core_type = #tpu.core_type<tc>, window_params = [{transform_indices = @transform_0, window_bounds = array<i64: 8, 4>}, {pipeline_mode = #tpu.pipeline_mode<synchronous>, transform_indices = @transform_1, window_bounds = array<i64: 4, 128>}, {pipeline_mode = #tpu.pipeline_mode<synchronous>, transform_indices = @transform_2, window_bounds = array<i64: 1, 128>}, {pipeline_mode = #tpu.pipeline_mode<synchronous>, transform_indices = @transform_3, window_bounds = array<i64: 128, 128>}, {transform_indices = @transform_4, window_bounds = array<i64: 8, 128>}]} {
    %c0 = arith.constant 0 : index
    %c0_0 = arith.constant 0 : index
    %0 = vector.load %arg1[%c0, %c0_0] : memref<8x4xi32, #tpu.memory_space<vmem>>, vector<8x4xi32>
    %1 = arith.sitofp %0 : vector<8x4xi32> to vector<8x4xf32>
    %c0_1 = arith.constant 0 : index
    %c0_2 = arith.constant 0 : index
    %2 = vector.load %arg2[%c0_1, %c0_2] : memref<4x128xf32, #tpu.memory_space<vmem>>, vector<4x128xf32>
    %cst = arith.constant dense<0.000000e+00> : vector<8x128xf32>
    %3 = tpu.matmul %1, %2, %cst {dimension_numbers = #tpu.dot_dimension_numbers<[1], [0], [0], [1], [0, 0, 1, 1], [], []>, precision = #tpu.contract_precision<fp32>} : vector<8x4xf32>, vector<4x128xf32>, vector<8x128xf32> -> vector<8x128xf32>
    %c0_3 = arith.constant 0 : index
    %c0_4 = arith.constant 0 : index
    %4 = vector.load %arg3[%c0_3, %c0_4] : memref<1x128xf32, #tpu.memory_space<vmem>>, vector<1x128xf32>
    %5 = vector.broadcast %4 : vector<1x128xf32> to vector<8x128xf32>
    %6 = arith.cmpf oeq, %3, %5 : vector<8x128xf32>
    %7 = arith.extui %6 : vector<8x128xi1> to vector<8x128xi32>
    %8 = arith.sitofp %7 : vector<8x128xi32> to vector<8x128xf32>
    %9 = arith.truncf %8 : vector<8x128xf32> to vector<8x128xbf16>
    %c0_5 = arith.constant 0 : index
    %c0_6 = arith.constant 0 : index
    %10 = vector.load %arg4[%c0_5, %c0_6] : memref<128x128xbf16, #tpu.memory_space<vmem>>, vector<128x128xbf16>
    %cst_7 = arith.constant dense<0.000000e+00> : vector<8x128xf32>
    %11 = tpu.matmul %9, %10, %cst_7 {dimension_numbers = #tpu.dot_dimension_numbers<[1], [0], [0], [1], [0, 0, 1, 1], [], []>} : vector<8x128xbf16>, vector<128x128xbf16>, vector<8x128xf32> -> vector<8x128xf32>
    %12 = arith.truncf %11 : vector<8x128xf32> to vector<8x128xbf16>
    %c0_8 = arith.constant 0 : index
    %c0_9 = arith.constant 0 : index
    %13 = vector.load %arg5[%c0_8, %c0_9] : memref<8x128xbf16, #tpu.memory_space<vmem>>, vector<8x128xbf16>
    tpu.vector_store %arg5[%c0_8, %c0_9], %12 {strides = array<i32>} : memref<8x128xbf16, #tpu.memory_space<vmem>>, vector<8x128xbf16>,
    return
  }
  func.func @transform_0(%arg0: i32) -> (i32, i32) {
    %c0_i32 = arith.constant 0 : i32
    %c0_i32_0 = arith.constant 0 : i32
    return %arg0, %c0_i32 : i32, i32
  }
  func.func @transform_1(%arg0: i32) -> (i32, i32) {
    %c0_i32 = arith.constant 0 : i32
    %c0_i32_0 = arith.constant 0 : i32
    %c0_i32_1 = arith.constant 0 : i32
    return %c0_i32, %c0_i32_0 : i32, i32
  }
  func.func @transform_2(%arg0: i32) -> (i32, i32) {
    %c0_i32 = arith.constant 0 : i32
    %c0_i32_0 = arith.constant 0 : i32
    %c0_i32_1 = arith.constant 0 : i32
    return %c0_i32, %c0_i32_0 : i32, i32
  }
  func.func @transform_3(%arg0: i32) -> (i32, i32) {
    %c0_i32 = arith.constant 0 : i32
    %c0_i32_0 = arith.constant 0 : i32
    %c0_i32_1 = arith.constant 0 : i32
    return %c0_i32, %c0_i32_0 : i32, i32
  }
  func.func @transform_4(%arg0: i32) -> (i32, i32) {
    %c0_i32 = arith.constant 0 : i32
    %c0_i32_0 = arith.constant 0 : i32
    return %arg0, %c0_i32 : i32, i32
  }
}

module attributes {stable_mosaic.version = 11 : i64} {
  func.func @kernel(%arg0: i32, %arg1: memref<8x4xi32, #tpu.memory_space<vmem>>, %arg2: memref<4x128xf32, #tpu.memory_space<vmem>>, %arg3: memref<1x128xf32, #tpu.memory_space<vmem>>, %arg4: memref<128x128xbf16, #tpu.memory_space<vmem>>, %arg5: memref<8x128xbf16, #tpu.memory_space<vmem>>) attributes {dimension_semantics = [#tpu.dimension_semantics<parallel>], iteration_bounds = array<i64: 1>, scalar_prefetch = 0 : i64, scratch_operands = 0 : i64, tpu.core_type = #tpu.core_type<tc>, window_params = [{transform_indices = @transform_0, window_bounds = array<i64: 8, 4>}, {pipeline_mode = #tpu.pipeline_mode<synchronous>, transform_indices = @transform_1, window_bounds = array<i64: 4, 128>}, {pipeline_mode = #tpu.pipeline_mode<synchronous>, transform_indices = @transform_2, window_bounds = array<i64: 1, 128>}, {pipeline_mode = #tpu.pipeline_mode<synchronous>, transform_indices = @transform_3, window_bounds = array<i64: 128, 128>}, {transform_indices = @transform_4, window_bounds = array<i64: 8, 128>}]} {
    %c0 = arith.constant 0 : index
    %c0_0 = arith.constant 0 : index
    %0 = vector.load %arg1[%c0, %c0_0] : memref<8x4xi32, #tpu.memory_space<vmem>>, vector<8x4xi32>
    %1 = arith.sitofp %0 : vector<8x4xi32> to vector<8x4xf32>
    %c0_1 = arith.constant 0 : index
    %c0_2 = arith.constant 0 : index
    %2 = vector.load %arg2[%c0_1, %c0_2] : memref<4x128xf32, #tpu.memory_space<vmem>>, vector<4x128xf32>
    %cst = arith.constant dense<0.000000e+00> : vector<8x128xf32>
    %3 = tpu.matmul %1, %2, %cst {dimension_numbers = #tpu.dot_dimension_numbers<[1], [0], [0], [1], [0, 0, 1, 1], [], []>, precision = #tpu.contract_precision<fp32>} : vector<8x4xf32>, vector<4x128xf32>, vector<8x128xf32> -> vector<8x128xf32>
    %c0_3 = arith.constant 0 : index
    %c0_4 = arith.constant 0 : index
    %4 = vector.load %arg3[%c0_3, %c0_4] : memref<1x128xf32, #tpu.memory_space<vmem>>, vector<1x128xf32>
    %5 = vector.broadcast %4 : vector<1x128xf32> to vector<8x128xf32>
    %6 = arith.cmpf oeq, %3, %5 : vector<8x128xf32>
    %7 = arith.extui %6 : vector<8x128xi1> to vector<8x128xi32>
    %8 = arith.sitofp %7 : vector<8x128xi32> to vector<8x128xf32>
    %9 = arith.truncf %8 : vector<8x128xf32> to vector<8x128xbf16>
    %c0_5 = arith.constant 0 : index
    %c0_6 = arith.constant 0 : index
    %10 = vector.load %arg4[%c0_5, %c0_6] : memref<128x128xbf16, #tpu.memory_space<vmem>>, vector<128x128xbf16>
    %cst_7 = arith.constant dense<0.000000e+00> : vector<8x128xf32>
    %11 = tpu.matmul %9, %10, %cst_7 {dimension_numbers = #tpu.dot_dimension_numbers<[1], [0], [0], [1], [0, 0, 1, 1], [], []>} : vector<8x128xbf16>, vector<128x128xbf16>, vector<8x128xf32> -> vector<8x128xf32>
    %12 = arith.truncf %11 : vector<8x128xf32> to vector<8x128xbf16>
    %c0_8 = arith.constant 0 : index
    %c0_9 = arith.constant 0 : index
    %13 = vector.load %arg5[%c0_8, %c0_9] : memref<8x128xbf16, #tpu.memory_space<vmem>>, vector<8x128xbf16>
    tpu.vector_store %arg5[%c0_8, %c0_9], %12 {strides = array<i32>} : memref<8x128xbf16, #tpu.memory_space<vmem>>, vector<8x128xbf16>,
    return
  }
  func.func @transform_0(%arg0: i32) -> (i32, i32) {
    %c0_i32 = arith.constant 0 : i32
    %c0_i32_0 = arith.constant 0 : i32
    return %arg0, %c0_i32 : i32, i32
  }
  func.func @transform_1(%arg0: i32) -> (i32, i32) {
    %c0_i32 = arith.constant 0 : i32
    %c0_i32_0 = arith.constant 0 : i32
    %c0_i32_1 = arith.constant 0 : i32
    return %c0_i32, %c0_i32_0 : i32, i32
  }
  func.func @transform_2(%arg0: i32) -> (i32, i32) {
    %c0_i32 = arith.constant 0 : i32
    %c0_i32_0 = arith.constant 0 : i32
    %c0_i32_1 = arith.constant 0 : i32
    return %c0_i32, %c0_i32_0 : i32, i32
  }
  func.func @transform_3(%arg0: i32) -> (i32, i32) {
    %c0_i32 = arith.constant 0 : i32
    %c0_i32_0 = arith.constant 0 : i32
    %c0_i32_1 = arith.constant 0 : i32
    return %c0_i32, %c0_i32_0 : i32, i32
  }
  func.func @transform_4(%arg0: i32) -> (i32, i32) {
    %c0_i32 = arith.constant 0 : i32
    %c0_i32_0 = arith.constant 0 : i32
    return %arg0, %c0_i32 : i32, i32
  }
}

</mosaic_0001>

<llo_original>
// kernel: tpu_custom_call.1
$region0: #{tpu_custom_call.1}
  #allocation0 [shape = 'u32[]', space=smem, size = 0x4, offset = 0x4, fixed_abs, tag = 'smem constant byte address 0x4 - core index']
  #allocation1 [shape = 'u32[72,128]{1,0:T(1,128)}', space=vmem, size = 0x9000, scoped, tag = 'internal scratch']
  %s0 = inlined_call_operand.vmem [shape: s32[8,4], index: 0, kind: input, shape index: {}]
  %s1 = inlined_call_operand.vmem [shape: f32[4,128], index: 1, kind: input, shape index: {}]
  %s2 = inlined_call_operand.vmem [shape: f32[1,128], index: 2, kind: input, shape index: {}]
  %s3 = inlined_call_operand.hbm [shape: bf16[128,128], index: 3, kind: input, shape index: {}]
  %s4 = inlined_call_operand.hbm [shape: bf16[8,128], index: 4, kind: output, shape index: {}]
  %s5 = sld [smem:[#allocation0]]
  $region30: #{tpu_custom_call.1} parent=0
    _
  %s7 = ssub.s32 1, %s5
  %s8 = scalar_select 0, %s7, %s5
  $region1: #{tpu_custom_call.1} parent=0
    #allocation2 [shape = 'u8[32768]{0}', space=vmem, size = 0x8000, scoped, tag = 'input window, operand 3, single buffered']
    #allocation3 [shape = 's32[1]{0}', space=sflag, size = 0x4, scoped, tag = 'scoped memory for tpu_custom_call.1']
    #allocation4 [shape = 's32[1]{0}', space=sflag, size = 0x4, scoped, tag = 'scoped memory for tpu_custom_call.1']
    #allocation5 [shape = 'u8[2048]{0}', space=vmem, size = 0x800, scoped, tag = 'output window, operand 0, single buffered']
    %9 = vsyncpa [#allocation3], 0
    %10 = vsyncpa [#allocation4], 0
    // Predicated region
    $region2: #{tpu_custom_call.1} parent=1 // pred_check
      _
    $region3: #{tpu_custom_call.1} parent=1 // pred_check_branch
      %12 = sbr.rel (0) target = $region5
    $region4: #{tpu_custom_call.1} parent=1 // pred_region
      _
    $region5: #{tpu_custom_call.1} parent=1 // pred_fallthru
      _
    // Predicated region
    $region6: #{tpu_custom_call.1} parent=1 // pred_check
      _
    $region7: #{tpu_custom_call.1} parent=1 // pred_check_branch
      %14 = sbr.rel (0) target = $region9
    $region8: #{tpu_custom_call.1} parent=1 // pred_region
      _
    $region9: #{tpu_custom_call.1} parent=1 // pred_fallthru
      _
    // Predicated region
    $region10: #{tpu_custom_call.1} parent=1 // pred_check
      _
    $region11: #{tpu_custom_call.1} parent=1 // pred_check_branch
      %16 = sbr.rel (0) target = $region13
    $region12: #{tpu_custom_call.1} parent=1 // pred_region
      _
    $region13: #{tpu_custom_call.1} parent=1 // pred_fallthru
      _
    // Predicated region
    $region14: #{tpu_custom_call.1} parent=1 // pred_check
      _
    $region15: #{tpu_custom_call.1} parent=1 // pred_check_branch
      %18 = sbr.rel (0) target = $region17
    $region16: #{tpu_custom_call.1} parent=1 // pred_region
      %20 = vsyncadd [#allocation3], 0
      %s21 = sshll.u32 %s3, 4
      %s22 = int_to_ptr.hbm [resolvable:$true] %s21
      %s23 = sshll.u32 [#allocation2], 4
      %s24 = int_to_ptr.vmem [resolvable:$true] %s23
      %29 = dma.hbm_to_vmem [thread:$0]  %s22, 1024, %s24, [#allocation3], 64, 64, 4
    $region17: #{tpu_custom_call.1} parent=1 // pred_fallthru
      _
    // Predicated region
    $region18: #{tpu_custom_call.1} parent=1 // pred_check
      _
    $region19: #{tpu_custom_call.1} parent=1 // pred_check_branch
      %31 = sbr.rel (0) target = $region21
    $region20: #{tpu_custom_call.1} parent=1 // pred_region
      %33 = dma.done [#allocation3], 1024
    $region21: #{tpu_custom_call.1} parent=1 // pred_fallthru
      _
    %v34 = vld [vmem:[%s0] sm:$0xff]
    %v35 = vcvt.s32.f32 %v34
    %v36 = vld [vmem:[%s1] sm:$0xf]
    %vm37 = vcmask 31744
    %v39 = vsel %vm37, %v35, 0
    %vm41 = vcmask 1043456
    %v43 = vsel %vm41, %v36, 0
    %45 = vmatpush.msra.mxu0 0.0
    %46 = vmatpush.msra.mxu0 0.0
    %47 = vmatpush.msra.mxu0 0.0
    %48 = vmatpush.msra.mxu0 0.0
    %49 = vmatpush.msra.mxu0 0.0
    %50 = vmatpush.msra.mxu0 0.0
    %51 = vmatpush.msra.mxu0 0.0
    %52 = vmatpush.msra.mxu0 0.0
    %53 = vmatpush.msra.mxu0 0.0
    %54 = vmatpush.msra.mxu0 0.0
    %55 = vmatpush.msra.mxu0 0.0
    %56 = vmatpush.msra.mxu0 0.0
    %57 = vmatpush.msra.mxu0 0.0
    %58 = vmatpush.msra.mxu0 0.0
    %59 = vmatpush.msra.mxu0 0.0
    %v60 = vand.u32 %v43, 4294901760
    %61 = vmatpush.msra.mxu0 %v60
    %v62 = vand.u32 %v39, 4294901760
    %v63 = vsub.f32 %v39, %v62
    %v64 = vand.u32 %v63, 4294901760
    %v65 = vsub.f32 %v63, %v64
    %v66 = vand.u32 %v65, 4294901760
    %67 = vmatmul.f32.gmra.mxu0 %v66
    %v68 = vpop.f32.mrf.mxu0
    %v69 = vadd.f32 0.0, %v68
    %70 = vdwg.mxu0
    %71 = vmatpush.msra.mxu0 0.0
    %72 = vmatpush.msra.mxu0 0.0
    %73 = vmatpush.msra.mxu0 0.0
    %74 = vmatpush.msra.mxu0 0.0
    %75 = vmatpush.msra.mxu0 0.0
    %76 = vmatpush.msra.mxu0 0.0
    %77 = vmatpush.msra.mxu0 0.0
    %78 = vmatpush.msra.mxu0 0.0
    %79 = vmatpush.msra.mxu0 0.0
    %80 = vmatpush.msra.mxu0 0.0
    %81 = vmatpush.msra.mxu0 0.0
    %82 = vmatpush.msra.mxu0 0.0
    %83 = vmatpush.msra.mxu0 0.0
    %84 = vmatpush.msra.mxu0 0.0
    %85 = vmatpush.msra.mxu0 0.0
    %v86 = vand.u32 %v43, 4294901760
    %v87 = vsub.f32 %v43, %v86
    %v88 = vand.u32 %v87, 4294901760
    %v89 = vsub.f32 %v87, %v88
    %v90 = vand.u32 %v89, 4294901760
    %91 = vmatpush.msra.mxu0 %v90
    %v92 = vand.u32 %v39, 4294901760
    %93 = vmatmul.f32.gmra.mxu0 %v92
    %v94 = vpop.f32.mrf.mxu0
    %v95 = vadd.f32 %v69, %v94
    %96 = vdwg.mxu0
    %97 = vmatpush.msra.mxu0 0.0
    %98 = vmatpush.msra.mxu0 0.0
    %99 = vmatpush.msra.mxu0 0.0
    %100 = vmatpush.msra.mxu0 0.0
    %101 = vmatpush.msra.mxu0 0.0
    %102 = vmatpush.msra.mxu0 0.0
    %103 = vmatpush.msra.mxu0 0.0
    %104 = vmatpush.msra.mxu0 0.0
    %105 = vmatpush.msra.mxu0 0.0
    %106 = vmatpush.msra.mxu0 0.0
    %107 = vmatpush.msra.mxu0 0.0
    %108 = vmatpush.msra.mxu0 0.0
    %109 = vmatpush.msra.mxu0 0.0
    %110 = vmatpush.msra.mxu0 0.0
    %111 = vmatpush.msra.mxu0 0.0
    %v112 = vand.u32 %v43, 4294901760
    %v113 = vsub.f32 %v43, %v112
    %114 = vmatpush.msra.mxu0 %v113
    %v115 = vand.u32 %v39, 4294901760
    %v116 = vsub.f32 %v39, %v115
    %117 = vmatmul.f32.gmra.mxu0 %v116
    %v118 = vpop.f32.mrf.mxu0
    %v119 = vadd.f32 %v95, %v118
    %120 = vdwg.mxu0
    %121 = vmatpush.msra.mxu0 0.0
    %122 = vmatpush.msra.mxu0 0.0
    %123 = vmatpush.msra.mxu0 0.0
    %124 = vmatpush.msra.mxu0 0.0
    %125 = vmatpush.msra.mxu0 0.0
    %126 = vmatpush.msra.mxu0 0.0
    %127 = vmatpush.msra.mxu0 0.0
    %128 = vmatpush.msra.mxu0 0.0
    %129 = vmatpush.msra.mxu0 0.0
    %130 = vmatpush.msra.mxu0 0.0
    %131 = vmatpush.msra.mxu0 0.0
    %132 = vmatpush.msra.mxu0 0.0
    %133 = vmatpush.msra.mxu0 0.0
    %134 = vmatpush.msra.mxu0 0.0
    %135 = vmatpush.msra.mxu0 0.0
    %v136 = vand.u32 %v43, 4294901760
    %137 = vmatpush.msra.mxu0 %v136
    %v138 = vand.u32 %v39, 4294901760
    %v139 = vsub.f32 %v39, %v138
    %v140 = vand.u32 %v139, 4294901760
    %141 = vmatmul.f32.gmra.mxu0 %v140
    %v142 = vpop.f32.mrf.mxu0
    %v143 = vadd.f32 %v119, %v142
    %144 = vdwg.mxu0
    %145 = vmatpush.msra.mxu0 0.0
    %146 = vmatpush.msra.mxu0 0.0
    %147 = vmatpush.msra.mxu0 0.0
    %148 = vmatpush.msra.mxu0 0.0
    %149 = vmatpush.msra.mxu0 0.0
    %150 = vmatpush.msra.mxu0 0.0
    %151 = vmatpush.msra.mxu0 0.0
    %152 = vmatpush.msra.mxu0 0.0
    %153 = vmatpush.msra.mxu0 0.0
    %154 = vmatpush.msra.mxu0 0.0
    %155 = vmatpush.msra.mxu0 0.0
    %156 = vmatpush.msra.mxu0 0.0
    %157 = vmatpush.msra.mxu0 0.0
    %158 = vmatpush.msra.mxu0 0.0
    %159 = vmatpush.msra.mxu0 0.0
    %v160 = vand.u32 %v43, 4294901760
    %v161 = vsub.f32 %v43, %v160
    %v162 = vand.u32 %v161, 4294901760
    %163 = vmatpush.msra.mxu0 %v162
    %v164 = vand.u32 %v39, 4294901760
    %165 = vmatmul.f32.gmra.mxu0 %v164
    %v166 = vpop.f32.mrf.mxu0
    %v167 = vadd.f32 %v143, %v166
    %168 = vdwg.mxu0
    %169 = vmatpush.msra.mxu0 0.0
    %170 = vmatpush.msra.mxu0 0.0
    %171 = vmatpush.msra.mxu0 0.0
    %172 = vmatpush.msra.mxu0 0.0
    %173 = vmatpush.msra.mxu0 0.0
    %174 = vmatpush.msra.mxu0 0.0
    %175 = vmatpush.msra.mxu0 0.0
    %176 = vmatpush.msra.mxu0 0.0
    %177 = vmatpush.msra.mxu0 0.0
    %178 = vmatpush.msra.mxu0 0.0
    %179 = vmatpush.msra.mxu0 0.0
    %180 = vmatpush.msra.mxu0 0.0
    %181 = vmatpush.msra.mxu0 0.0
    %182 = vmatpush.msra.mxu0 0.0
    %183 = vmatpush.msra.mxu0 0.0
    %v184 = vand.u32 %v43, 4294901760
    %185 = vmatpush.msra.mxu0 %v184
    %v186 = vand.u32 %v39, 4294901760
    %187 = vmatmul.f32.gmra.mxu0 %v186
    %v188 = vpop.f32.mrf.mxu0
    %v189 = vadd.f32 %v167, %v188
    %190 = vdwg.mxu0
    %v191 = vld [vmem:[%s2] sm:$0x1]
    %v193 = vperm.slane %v191, 0
    %vm195 = vcmp.eq.f32.partialorder %v189, %v193
    %v196 = vsel %vm195, 1, 0
    %v197 = vcvt.s32.f32 %v196
    %v198 = vpack.c.bf16 %v197, %v197
    %v199 = vld [vmem:[#allocation2] sm:$0xf]
    %v200 = vld [vmem:[#allocation2 + $0x4] sm:$0xf]
    %v201 = vld [vmem:[#allocation2 + $0x8] sm:$0xf]
    %v202 = vld [vmem:[#allocation2 + $0xc] sm:$0xf]
    %v203 = vld [vmem:[#allocation2 + $0x10] sm:$0xf]
    %v204 = vld [vmem:[#allocation2 + $0x14] sm:$0xf]
    %v205 = vld [vmem:[#allocation2 + $0x18] sm:$0xf]
    %v206 = vld [vmem:[#allocation2 + $0x1c] sm:$0xf]
    %v207 = vld [vmem:[#allocation2 + $0x20] sm:$0xf]
    %v208 = vld [vmem:[#allocation2 + $0x24] sm:$0xf]
    %v209 = vld [vmem:[#allocation2 + $0x28] sm:$0xf]
    %v210 = vld [vmem:[#allocation2 + $0x2c] sm:$0xf]
    %v211 = vld [vmem:[#allocation2 + $0x30] sm:$0xf]
    %v212 = vld [vmem:[#allocation2 + $0x34] sm:$0xf]
    %v213 = vld [vmem:[#allocation2 + $0x38] sm:$0xf]
    %v214 = vld [vmem:[#allocation2 + $0x3c] sm:$0xf]
    %v231 = vunpack.c.l.b16 %v199
    %v232 = vunpack.c.l.b16 %v200
    %v233 = vunpack.c.l.b16 %v201
    %v234 = vunpack.c.l.b16 %v202
    %v235 = vunpack.c.l.b16 %v203
    %v236 = vunpack.c.l.b16 %v204
    %v237 = vunpack.c.l.b16 %v205
    %v238 = vunpack.c.l.b16 %v206
    %v239 = vunpack.c.l.b16 %v207
    %v240 = vunpack.c.l.b16 %v208
    %v241 = vunpack.c.l.b16 %v209
    %v242 = vunpack.c.l.b16 %v210
    %v243 = vunpack.c.l.b16 %v211
    %v244 = vunpack.c.l.b16 %v212
    %v245 = vunpack.c.l.b16 %v213
    %v246 = vunpack.c.l.b16 %v214
    %v247 = vpack.c.b16 %v232, %v231
    %v248 = vpack.c.b16 %v234, %v233
    %v249 = vpack.c.b16 %v236, %v235
    %v250 = vpack.c.b16 %v238, %v237
    %v251 = vpack.c.b16 %v240, %v239
    %v252 = vpack.c.b16 %v242, %v241
    %v253 = vpack.c.b16 %v244, %v243
    %v254 = vpack.c.b16 %v246, %v245
    %263 = vmatpush.bf16.msra.mxu0 %v254
    %264 = vmatpush.bf16.msra.mxu0 %v253
    %265 = vmatpush.bf16.msra.mxu0 %v252
    %266 = vmatpush.bf16.msra.mxu0 %v251
    %267 = vmatpush.bf16.msra.mxu0 %v250
    %268 = vmatpush.bf16.msra.mxu0 %v249
    %269 = vmatpush.bf16.msra.mxu0 %v248
    %270 = vmatpush.bf16.msra.mxu0 %v247
    %271 = vmatmul.bf16.gmra.mxu0 %v198
    %v272 = vpop.f32.mrf.mxu0
    %v273 = vadd.f32 0.0, %v272
    %v274 = vpop.f32.mrf.mxu0
    %275 = vdwg.mxu0
    %v276 = vpack.c.bf16 %v273, %v273
    %277 = vst [vmem:[#allocation5] sm:$0xf] %v276
    // Predicated region
    $region22: #{tpu_custom_call.1} parent=1 // pred_check
      _
    $region23: #{tpu_custom_call.1} parent=1 // pred_check_branch
      %279 = sbr.rel (0) target = $region25
    $region24: #{tpu_custom_call.1} parent=1 // pred_region
      %281 = vsyncadd [#allocation4], 0
      %s283 = sshll.u32 [#allocation5], 4
      %s284 = int_to_ptr.vmem [resolvable:$true] %s283
      %s285 = sshll.u32 %s4, 4
      %s286 = int_to_ptr.hbm [resolvable:$true] %s285
      %288 = dma.vmem_to_hbm [thread:$0]  %s284, 64, %s286, [#allocation4]
    $region25: #{tpu_custom_call.1} parent=1 // pred_fallthru
      _
    // Predicated region
    $region26: #{tpu_custom_call.1} parent=1 // pred_check
      _
    $region27: #{tpu_custom_call.1} parent=1 // pred_check_branch
      %290 = sbr.rel (0) target = $region29
    $region28: #{tpu_custom_call.1} parent=1 // pred_region
      %292 = dma.done [#allocation4], 64
    $region29: #{tpu_custom_call.1} parent=1 // pred_fallthru
      _
    %293 = vsyncpa [#allocation3], 1
    %294 = vsyncpa [#allocation4], 1

// kernel: tpu_custom_call.1
$region0: #{tpu_custom_call.1}
  #allocation0 [shape = 'u32[]', space=smem, size = 0x4, offset = 0x4, fixed_abs, tag = 'smem constant byte address 0x4 - core index']
  #allocation1 [shape = 'u32[72,128]{1,0:T(1,128)}', space=vmem, size = 0x9000, scoped, tag = 'internal scratch']
  %s0 = inlined_call_operand.vmem [shape: s32[8,4], index: 0, kind: input, shape index: {}]
  %s1 = inlined_call_operand.vmem [shape: f32[4,128], index: 1, kind: input, shape index: {}]
  %s2 = inlined_call_operand.vmem [shape: f32[1,128], index: 2, kind: input, shape index: {}]
  %s3 = inlined_call_operand.hbm [shape: bf16[128,128], index: 3, kind: input, shape index: {}]
  %s4 = inlined_call_operand.hbm [shape: bf16[8,128], index: 4, kind: output, shape index: {}]
  %s5 = sld [smem:[#allocation0]]
  $region30: #{tpu_custom_call.1} parent=0
    _
  %s7 = ssub.s32 1, %s5
  %s8 = scalar_select 0, %s7, %s5
  $region1: #{tpu_custom_call.1} parent=0
    #allocation2 [shape = 'u8[32768]{0}', space=vmem, size = 0x8000, scoped, tag = 'input window, operand 3, single buffered']
    #allocation3 [shape = 's32[1]{0}', space=sflag, size = 0x4, scoped, tag = 'scoped memory for tpu_custom_call.1']
    #allocation4 [shape = 's32[1]{0}', space=sflag, size = 0x4, scoped, tag = 'scoped memory for tpu_custom_call.1']
    #allocation5 [shape = 'u8[2048]{0}', space=vmem, size = 0x800, scoped, tag = 'output window, operand 0, single buffered']
    %9 = vsyncpa [#allocation3], 0
    %10 = vsyncpa [#allocation4], 0
    // Predicated region
    $region2: #{tpu_custom_call.1} parent=1 // pred_check
      _
    $region3: #{tpu_custom_call.1} parent=1 // pred_check_branch
      %12 = sbr.rel (0) target = $region5
    $region4: #{tpu_custom_call.1} parent=1 // pred_region
      _
    $region5: #{tpu_custom_call.1} parent=1 // pred_fallthru
      _
    // Predicated region
    $region6: #{tpu_custom_call.1} parent=1 // pred_check
      _
    $region7: #{tpu_custom_call.1} parent=1 // pred_check_branch
      %14 = sbr.rel (0) target = $region9
    $region8: #{tpu_custom_call.1} parent=1 // pred_region
      _
    $region9: #{tpu_custom_call.1} parent=1 // pred_fallthru
      _
    // Predicated region
    $region10: #{tpu_custom_call.1} parent=1 // pred_check
      _
    $region11: #{tpu_custom_call.1} parent=1 // pred_check_branch
      %16 = sbr.rel (0) target = $region13
    $region12: #{tpu_custom_call.1} parent=1 // pred_region
      _
    $region13: #{tpu_custom_call.1} parent=1 // pred_fallthru
      _
    // Predicated region
    $region14: #{tpu_custom_call.1} parent=1 // pred_check
      _
    $region15: #{tpu_custom_call.1} parent=1 // pred_check_branch
      %18 = sbr.rel (0) target = $region17
    $region16: #{tpu_custom_call.1} parent=1 // pred_region
      %20 = vsyncadd [#allocation3], 0
      %s21 = sshll.u32 %s3, 4
      %s22 = int_to_ptr.hbm [resolvable:$true] %s21
      %s23 = sshll.u32 [#allocation2], 4
      %s24 = int_to_ptr.vmem [resolvable:$true] %s23
      %29 = dma.hbm_to_vmem [thread:$0]  %s22, 1024, %s24, [#allocation3], 64, 64, 4
    $region17: #{tpu_custom_call.1} parent=1 // pred_fallthru
      _
    // Predicated region
    $region18: #{tpu_custom_call.1} parent=1 // pred_check
      _
    $region19: #{tpu_custom_call.1} parent=1 // pred_check_branch
      %31 = sbr.rel (0) target = $region21
    $region20: #{tpu_custom_call.1} parent=1 // pred_region
      %33 = dma.done [#allocation3], 1024
    $region21: #{tpu_custom_call.1} parent=1 // pred_fallthru
      _
    %v34 = vld [vmem:[%s0] sm:$0xff]
    %v35 = vcvt.s32.f32 %v34
    %v36 = vld [vmem:[%s1] sm:$0xf]
    %vm37 = vcmask 31744
    %v39 = vsel %vm37, %v35, 0
    %vm41 = vcmask 1043456
    %v43 = vsel %vm41, %v36, 0
    %45 = vmatpush.msra.mxu0 0.0
    %46 = vmatpush.msra.mxu0 0.0
    %47 = vmatpush.msra.mxu0 0.0
    %48 = vmatpush.msra.mxu0 0.0
    %49 = vmatpush.msra.mxu0 0.0
    %50 = vmatpush.msra.mxu0 0.0
    %51 = vmatpush.msra.mxu0 0.0
    %52 = vmatpush.msra.mxu0 0.0
    %53 = vmatpush.msra.mxu0 0.0
    %54 = vmatpush.msra.mxu0 0.0
    %55 = vmatpush.msra.mxu0 0.0
    %56 = vmatpush.msra.mxu0 0.0
    %57 = vmatpush.msra.mxu0 0.0
    %58 = vmatpush.msra.mxu0 0.0
    %59 = vmatpush.msra.mxu0 0.0
    %v60 = vand.u32 %v43, 4294901760
    %61 = vmatpush.msra.mxu0 %v60
    %v62 = vand.u32 %v39, 4294901760
    %v63 = vsub.f32 %v39, %v62
    %v64 = vand.u32 %v63, 4294901760
    %v65 = vsub.f32 %v63, %v64
    %v66 = vand.u32 %v65, 4294901760
    %67 = vmatmul.f32.gmra.mxu0 %v66
    %v68 = vpop.f32.mrf.mxu0
    %v69 = vadd.f32 0.0, %v68
    %70 = vdwg.mxu0
    %71 = vmatpush.msra.mxu0 0.0
    %72 = vmatpush.msra.mxu0 0.0
    %73 = vmatpush.msra.mxu0 0.0
    %74 = vmatpush.msra.mxu0 0.0
    %75 = vmatpush.msra.mxu0 0.0
    %76 = vmatpush.msra.mxu0 0.0
    %77 = vmatpush.msra.mxu0 0.0
    %78 = vmatpush.msra.mxu0 0.0
    %79 = vmatpush.msra.mxu0 0.0
    %80 = vmatpush.msra.mxu0 0.0
    %81 = vmatpush.msra.mxu0 0.0
    %82 = vmatpush.msra.mxu0 0.0
    %83 = vmatpush.msra.mxu0 0.0
    %84 = vmatpush.msra.mxu0 0.0
    %85 = vmatpush.msra.mxu0 0.0
    %v86 = vand.u32 %v43, 4294901760
    %v87 = vsub.f32 %v43, %v86
    %v88 = vand.u32 %v87, 4294901760
    %v89 = vsub.f32 %v87, %v88
    %v90 = vand.u32 %v89, 4294901760
    %91 = vmatpush.msra.mxu0 %v90
    %v92 = vand.u32 %v39, 4294901760
    %93 = vmatmul.f32.gmra.mxu0 %v92
    %v94 = vpop.f32.mrf.mxu0
    %v95 = vadd.f32 %v69, %v94
    %96 = vdwg.mxu0
    %97 = vmatpush.msra.mxu0 0.0
    %98 = vmatpush.msra.mxu0 0.0
    %99 = vmatpush.msra.mxu0 0.0
    %100 = vmatpush.msra.mxu0 0.0
    %101 = vmatpush.msra.mxu0 0.0
    %102 = vmatpush.msra.mxu0 0.0
    %103 = vmatpush.msra.mxu0 0.0
    %104 = vmatpush.msra.mxu0 0.0
    %105 = vmatpush.msra.mxu0 0.0
    %106 = vmatpush.msra.mxu0 0.0
    %107 = vmatpush.msra.mxu0 0.0
    %108 = vmatpush.msra.mxu0 0.0
    %109 = vmatpush.msra.mxu0 0.0
    %110 = vmatpush.msra.mxu0 0.0
    %111 = vmatpush.msra.mxu0 0.0
    %v112 = vand.u32 %v43, 4294901760
    %v113 = vsub.f32 %v43, %v112
    %114 = vmatpush.msra.mxu0 %v113
    %v115 = vand.u32 %v39, 4294901760
    %v116 = vsub.f32 %v39, %v115
    %117 = vmatmul.f32.gmra.mxu0 %v116
    %v118 = vpop.f32.mrf.mxu0
    %v119 = vadd.f32 %v95, %v118
    %120 = vdwg.mxu0
    %121 = vmatpush.msra.mxu0 0.0
    %122 = vmatpush.msra.mxu0 0.0
    %123 = vmatpush.msra.mxu0 0.0
    %124 = vmatpush.msra.mxu0 0.0
    %125 = vmatpush.msra.mxu0 0.0
    %126 = vmatpush.msra.mxu0 0.0
    %127 = vmatpush.msra.mxu0 0.0
    %128 = vmatpush.msra.mxu0 0.0
    %129 = vmatpush.msra.mxu0 0.0
    %130 = vmatpush.msra.mxu0 0.0
    %131 = vmatpush.msra.mxu0 0.0
    %132 = vmatpush.msra.mxu0 0.0
    %133 = vmatpush.msra.mxu0 0.0
    %134 = vmatpush.msra.mxu0 0.0
    %135 = vmatpush.msra.mxu0 0.0
    %v136 = vand.u32 %v43, 4294901760
    %137 = vmatpush.msra.mxu0 %v136
    %v138 = vand.u32 %v39, 4294901760
    %v139 = vsub.f32 %v39, %v138
    %v140 = vand.u32 %v139, 4294901760
    %141 = vmatmul.f32.gmra.mxu0 %v140
    %v142 = vpop.f32.mrf.mxu0
    %v143 = vadd.f32 %v119, %v142
    %144 = vdwg.mxu0
    %145 = vmatpush.msra.mxu0 0.0
    %146 = vmatpush.msra.mxu0 0.0
    %147 = vmatpush.msra.mxu0 0.0
    %148 = vmatpush.msra.mxu0 0.0
    %149 = vmatpush.msra.mxu0 0.0
    %150 = vmatpush.msra.mxu0 0.0
    %151 = vmatpush.msra.mxu0 0.0
    %152 = vmatpush.msra.mxu0 0.0
    %153 = vmatpush.msra.mxu0 0.0
    %154 = vmatpush.msra.mxu0 0.0
    %155 = vmatpush.msra.mxu0 0.0
    %156 = vmatpush.msra.mxu0 0.0
    %157 = vmatpush.msra.mxu0 0.0
    %158 = vmatpush.msra.mxu0 0.0
    %159 = vmatpush.msra.mxu0 0.0
    %v160 = vand.u32 %v43, 4294901760
    %v161 = vsub.f32 %v43, %v160
    %v162 = vand.u32 %v161, 4294901760
    %163 = vmatpush.msra.mxu0 %v162
    %v164 = vand.u32 %v39, 4294901760
    %165 = vmatmul.f32.gmra.mxu0 %v164
    %v166 = vpop.f32.mrf.mxu0
    %v167 = vadd.f32 %v143, %v166
    %168 = vdwg.mxu0
    %169 = vmatpush.msra.mxu0 0.0
    %170 = vmatpush.msra.mxu0 0.0
    %171 = vmatpush.msra.mxu0 0.0
    %172 = vmatpush.msra.mxu0 0.0
    %173 = vmatpush.msra.mxu0 0.0
    %174 = vmatpush.msra.mxu0 0.0
    %175 = vmatpush.msra.mxu0 0.0
    %176 = vmatpush.msra.mxu0 0.0
    %177 = vmatpush.msra.mxu0 0.0
    %178 = vmatpush.msra.mxu0 0.0
    %179 = vmatpush.msra.mxu0 0.0
    %180 = vmatpush.msra.mxu0 0.0
    %181 = vmatpush.msra.mxu0 0.0
    %182 = vmatpush.msra.mxu0 0.0
    %183 = vmatpush.msra.mxu0 0.0
    %v184 = vand.u32 %v43, 4294901760
    %185 = vmatpush.msra.mxu0 %v184
    %v186 = vand.u32 %v39, 4294901760
    %187 = vmatmul.f32.gmra.mxu0 %v186
    %v188 = vpop.f32.mrf.mxu0
    %v189 = vadd.f32 %v167, %v188
    %190 = vdwg.mxu0
    %v191 = vld [vmem:[%s2] sm:$0x1]
    %v193 = vperm.slane %v191, 0
    %vm195 = vcmp.eq.f32.partialorder %v189, %v193
    %v196 = vsel %vm195, 1, 0
    %v197 = vcvt.s32.f32 %v196
    %v198 = vpack.c.bf16 %v197, %v197
    %v199 = vld [vmem:[#allocation2] sm:$0xf]
    %v200 = vld [vmem:[#allocation2 + $0x4] sm:$0xf]
    %v201 = vld [vmem:[#allocation2 + $0x8] sm:$0xf]
    %v202 = vld [vmem:[#allocation2 + $0xc] sm:$0xf]
    %v203 = vld [vmem:[#allocation2 + $0x10] sm:$0xf]
    %v204 = vld [vmem:[#allocation2 + $0x14] sm:$0xf]
    %v205 = vld [vmem:[#allocation2 + $0x18] sm:$0xf]
    %v206 = vld [vmem:[#allocation2 + $0x1c] sm:$0xf]
    %v207 = vld [vmem:[#allocation2 + $0x20] sm:$0xf]
    %v208 = vld [vmem:[#allocation2 + $0x24] sm:$0xf]
    %v209 = vld [vmem:[#allocation2 + $0x28] sm:$0xf]
    %v210 = vld [vmem:[#allocation2 + $0x2c] sm:$0xf]
    %v211 = vld [vmem:[#allocation2 + $0x30] sm:$0xf]
    %v212 = vld [vmem:[#allocation2 + $0x34] sm:$0xf]
    %v213 = vld [vmem:[#allocation2 + $0x38] sm:$0xf]
    %v214 = vld [vmem:[#allocation2 + $0x3c] sm:$0xf]
    %v231 = vunpack.c.l.b16 %v199
    %v232 = vunpack.c.l.b16 %v200
    %v233 = vunpack.c.l.b16 %v201
    %v234 = vunpack.c.l.b16 %v202
    %v235 = vunpack.c.l.b16 %v203
    %v236 = vunpack.c.l.b16 %v204
    %v237 = vunpack.c.l.b16 %v205
    %v238 = vunpack.c.l.b16 %v206
    %v239 = vunpack.c.l.b16 %v207
    %v240 = vunpack.c.l.b16 %v208
    %v241 = vunpack.c.l.b16 %v209
    %v242 = vunpack.c.l.b16 %v210
    %v243 = vunpack.c.l.b16 %v211
    %v244 = vunpack.c.l.b16 %v212
    %v245 = vunpack.c.l.b16 %v213
    %v246 = vunpack.c.l.b16 %v214
    %v247 = vpack.c.b16 %v232, %v231
    %v248 = vpack.c.b16 %v234, %v233
    %v249 = vpack.c.b16 %v236, %v235
    %v250 = vpack.c.b16 %v238, %v237
    %v251 = vpack.c.b16 %v240, %v239
    %v252 = vpack.c.b16 %v242, %v241
    %v253 = vpack.c.b16 %v244, %v243
    %v254 = vpack.c.b16 %v246, %v245
    %263 = vmatpush.bf16.msra.mxu0 %v254
    %264 = vmatpush.bf16.msra.mxu0 %v253
    %265 = vmatpush.bf16.msra.mxu0 %v252
    %266 = vmatpush.bf16.msra.mxu0 %v251
    %267 = vmatpush.bf16.msra.mxu0 %v250
    %268 = vmatpush.bf16.msra.mxu0 %v249
    %269 = vmatpush.bf16.msra.mxu0 %v248
    %270 = vmatpush.bf16.msra.mxu0 %v247
    %271 = vmatmul.bf16.gmra.mxu0 %v198
    %v272 = vpop.f32.mrf.mxu0
    %v273 = vadd.f32 0.0, %v272
    %v274 = vpop.f32.mrf.mxu0
    %275 = vdwg.mxu0
    %v276 = vpack.c.bf16 %v273, %v273
    %277 = vst [vmem:[#allocation5] sm:$0xf] %v276
    // Predicated region
    $region22: #{tpu_custom_call.1} parent=1 // pred_check
      _
    $region23: #{tpu_custom_call.1} parent=1 // pred_check_branch
      %279 = sbr.rel (0) target = $region25
    $region24: #{tpu_custom_call.1} parent=1 // pred_region
      %281 = vsyncadd [#allocation4], 0
      %s283 = sshll.u32 [#allocation5], 4
      %s284 = int_to_ptr.vmem [resolvable:$true] %s283
      %s285 = sshll.u32 %s4, 4
      %s286 = int_to_ptr.hbm [resolvable:$true] %s285
      %288 = dma.vmem_to_hbm [thread:$0]  %s284, 64, %s286, [#allocation4]
    $region25: #{tpu_custom_call.1} parent=1 // pred_fallthru
      _
    // Predicated region
    $region26: #{tpu_custom_call.1} parent=1 // pred_check
      _
    $region27: #{tpu_custom_call.1} parent=1 // pred_check_branch
      %290 = sbr.rel (0) target = $region29
    $region28: #{tpu_custom_call.1} parent=1 // pred_region
      %292 = dma.done [#allocation4], 64
    $region29: #{tpu_custom_call.1} parent=1 // pred_fallthru
      _
    %293 = vsyncpa [#allocation3], 1
    %294 = vsyncpa [#allocation4], 1

</llo_original>
